<compile_context>
chip_gen: v7x
topology: tpu7x:2x2x1
jax: 0.10.0
libtpu: 0.0.40
codegen_flags: <defaults>
</compile_context>

<pallas_src>
import jax
import jax.numpy as jnp
from jax.experimental import pallas as pl
from jax.experimental.pallas import tpu as pltpu


def _round_up(n, m):
    return ((n + m - 1) // m) * m


def _make_mlp_kernel(num_layers, out_pdims):
    """Kernel ref order: x, w_0 .. w_{L}, bias_stack, out."""

    def kernel(x_ref, *rest):
        out_ref = rest[-1]
        bias_ref = rest[-2]
        w_refs = rest[:num_layers]

        # f32 -> bf16 cast folded into the kernel (no extra wrapper HBM pass).
        h = x_ref[...].astype(jnp.bfloat16)                # (tile_b, in_feat)
        for l in range(num_layers):
            od = out_pdims[l]
            z = jnp.dot(h, w_refs[l][...],                 # MXU: bf16 x bf16 -> f32
                        preferred_element_type=jnp.float32)
            z = z + bias_ref[l:l + 1, :od]                 # f32 bias add (VPU)
            if l + 1 < num_layers:
                # ReLU in f32 (v5e-safe), cast back to bf16 for the next matmul.
                # Dropout(p=0.5) == identity in eval mode.
                h = jnp.maximum(z, 0.0).astype(jnp.bfloat16)
            else:
                # bf16 store halves the output HBM stream; still lane-dense.
                out_ref[...] = z.astype(out_ref.dtype)

    return kernel


def _choose_tile_b(B, tile_b):
    """Batch tile: multiple of 32 sublanes; keep grid_b >= 2 when possible."""
    tile_b = max(32, _round_up(tile_b, 32))
    b_ceil = _round_up(B, 32)
    tile_b = min(tile_b, b_ceil)
    # v7x shards the "parallel" grid axis over its 2 TensorCores; make sure
    # there are at least 2 grid steps when the batch allows it (harmless on
    # single-TC v5e/v6e).
    if b_ceil // tile_b < 2 and b_ceil >= 64:
        tile_b = _round_up(b_ceil // 2, 32)
    b_pad = _round_up(B, tile_b)
    return tile_b, b_pad


def mlp_forward(x, folded_layers, *, tile_b=1024):
    """Fused MLP forward as a single batch-tiled Pallas call.

    x:             (B, num_inputs) float32 (cast to bf16 inside the kernel)
    folded_layers: list of (w (in, out), b (1, out)) with eval-mode BN already
                   folded in; the last entry is the output layer.
    Returns (B, num_outputs) float32.
    """
    B, f_in = x.shape
    num_layers = len(folded_layers)
    dims = [f_in] + [w.shape[1] for (w, _) in folded_layers]

    # Lane-dense (128-multiple) dims for in-kernel activations and the output.
    # The x feature dim itself stays unpadded (block last dim == full array
    # dim), so the x HBM read carries no padding bytes.
    out_pdims = [_round_up(d, 128) for d in dims[1:]]
    k_dims = [f_in] + out_pdims[:-1]          # matmul K per layer

    tile_b, b_pad = _choose_tile_b(B, tile_b)
    grid_b = b_pad // tile_b

    # Only materialize a padded copy of x when the batch is not a tile multiple.
    x_in = x if b_pad == B else jnp.pad(x, ((0, b_pad - B), (0, 0)))

    # Zero-pad weights to lane-dense shapes (zero output columns stay exactly
    # 0 through bias/ReLU, so padded lanes never carry garbage).
    w_pads, bias_rows = [], []
    max_out = max(out_pdims)
    for l, (w, b) in enumerate(folded_layers):
        wp = jnp.zeros((k_dims[l], out_pdims[l]), jnp.bfloat16)
        wp = wp.at[:w.shape[0], :w.shape[1]].set(w.astype(jnp.bfloat16))
        w_pads.append(wp)
        bias_rows.append(jnp.pad(b[0].astype(jnp.float32),
                                 (0, max_out - b.shape[1])))
    bias_stack = jnp.stack(bias_rows)          # (num_layers, max_out) f32

    kernel = _make_mlp_kernel(num_layers, out_pdims)
    flat_inputs = [x_in] + w_pads + [bias_stack]

    in_specs = [pl.BlockSpec((tile_b, f_in), lambda i: (i, 0))]
    # Whole-weight blocks with a constant index map -> resident across steps.
    # TODO(synk): once per-layer weights reach multiple MiB (esp. on v7x's
    # 64 MiB VMEM), switch weight/bias specs to pipeline_mode=pl.Buffered(1),
    # add a K-reduction grid axis with a VMEM accumulator, and set
    # vmem_limit_bytes explicitly.
    in_specs += [pl.BlockSpec(wp.shape, lambda i: (0, 0)) for wp in w_pads]
    in_specs += [pl.BlockSpec(bias_stack.shape, lambda i: (0, 0))]
    out_spec = pl.BlockSpec((tile_b, out_pdims[-1]), lambda i: (i, 0))

    flops = 2 * b_pad * sum(k_dims[l] * out_pdims[l] for l in range(num_layers))
    bytes_accessed = (b_pad * f_in * 4                       # x read (f32, unpadded)
                      + sum(wp.size * 2 for wp in w_pads)    # weights (bf16, once)
                      + bias_stack.size * 4                  # biases (once)
                      + b_pad * out_pdims[-1] * 2)           # out write (bf16)

    out_padded = pl.pallas_call(
        kernel,
        out_shape=jax.ShapeDtypeStruct((b_pad, out_pdims[-1]), jnp.bfloat16),
        grid_spec=pltpu.PrefetchScalarGridSpec(
            num_scalar_prefetch=0,
            grid=(grid_b,),
            in_specs=in_specs,
            out_specs=out_spec,
        ),
        compiler_params=pltpu.CompilerParams(
            dimension_semantics=("parallel",)),
        cost_estimate=pl.CostEstimate(
            flops=flops, transcendentals=0, bytes_accessed=bytes_accessed),
    )(*flat_inputs)

    return out_padded[:B, :dims[-1]].astype(jnp.float32)


def init_params(key, num_inputs, num_outputs, num_hiddens_list):
    """Deterministic raw parameters mimicking the PyTorch module."""
    hidden = []
    in_features = num_inputs
    for h in num_hiddens_list:
        key, kw, kb, kg, kbeta, km, kv = jax.random.split(key, 7)
        bound = 1.0 / jnp.sqrt(jnp.float32(in_features))
        # nn.Linear-style init, stored as (in, out) so the kernel does X @ W.
        w = jax.random.uniform(kw, (in_features, h), jnp.float32, -bound, bound)
        b = jax.random.uniform(kb, (1, h), jnp.float32, -bound, bound)
        # BatchNorm1d parameters / running stats (deterministic, non-trivial).
        gamma = 1.0 + 0.1 * jax.random.normal(kg, (1, h), jnp.float32)
        beta = 0.1 * jax.random.normal(kbeta, (1, h), jnp.float32)
        running_mean = 0.05 * jax.random.normal(km, (1, h), jnp.float32)
        running_var = 1.0 + 0.1 * jax.random.uniform(kv, (1, h), jnp.float32)
        hidden.append((w, b, gamma, beta, running_mean, running_var))
        in_features = h

    key, kwo, kbo = jax.random.split(key, 3)
    bound = 1.0 / jnp.sqrt(jnp.float32(in_features))
    out_w = jax.random.uniform(kwo, (in_features, num_outputs), jnp.float32,
                               -bound, bound)
    out_b = jax.random.uniform(kbo, (1, num_outputs), jnp.float32, -bound, bound)
    return hidden, out_w, out_b


def fold_bn_eval(hidden_raw, out_w, out_b, eps=1e-5):
    """Fold eval-mode BatchNorm1d into each Linear (kept in f32 here;
    the wrapper casts weights to bf16 when padding)."""
    folded = []
    for (w, b, gamma, beta, mean, var) in hidden_raw:
        scale = gamma / jnp.sqrt(var + eps)          # (1, hidden)
        shift = beta - mean * scale
        folded.append(((w * scale).astype(jnp.float32),
                       (b * scale + shift).astype(jnp.float32)))
    folded.append((out_w.astype(jnp.float32), out_b.astype(jnp.float32)))
    return folded


def reference_forward(x, folded_layers):
    """Pure-JAX reference with the same bf16-matmul / f32-epilogue policy."""
    h = x.astype(jnp.float32)
    for l, (w, b) in enumerate(folded_layers):
        z = jnp.dot(h.astype(jnp.bfloat16), w.astype(jnp.bfloat16),
                    preferred_element_type=jnp.float32) + b
        h = jnp.maximum(z, 0.0) if l + 1 < len(folded_layers) else z
    return h


if __name__ == "__main__":
    num_inputs = 32
    num_outputs = 16
    num_hiddens_list = [64, 32]

    key = jax.random.PRNGKey(0)
    key, kx = jax.random.split(key)
    # Arbitrary leading shape; the module does X.view(-1, in_features).
    x_raw = jax.random.normal(kx, (8, 8, num_inputs), jnp.float32)
    x = x_raw.reshape(-1, num_inputs)                    # (64, 32)

    hidden_raw, out_w, out_b = init_params(key, num_inputs, num_outputs,
                                           num_hiddens_list)
    folded = fold_bn_eval(hidden_raw, out_w, out_b)

    # Default tile_b=1024 collapses to 32-row tiles / grid=(2,) at this toy
    # batch (exercises the parallel batch grid and keeps both v7x TCs busy);
    # at production batch sizes it stays at 1024-row tiles.
    out = mlp_forward(x, folded)
    out = jax.block_until_ready(out)

    ref = reference_forward(x, folded)
    assert out.shape == (x.shape[0], num_outputs)
    assert jnp.allclose(out, ref, atol=1e-2, rtol=1e-2), "mismatch vs reference"

    print("KERNEL_OK")
</pallas_src>

<mosaic_0001>
module attributes {stable_mosaic.version = 11 : i64} {
  func.func @kernel(%arg0: i32, %arg1: memref<32x32xf32, #tpu.memory_space<vmem>>, %arg2: memref<32x128xbf16, #tpu.memory_space<vmem>>, %arg3: memref<128x128xbf16, #tpu.memory_space<vmem>>, %arg4: memref<128x128xbf16, #tpu.memory_space<vmem>>, %arg5: memref<3x128xf32, #tpu.memory_space<vmem>>, %arg6: memref<32x128xbf16, #tpu.memory_space<vmem>>) attributes {dimension_semantics = [#tpu.dimension_semantics<parallel>], iteration_bounds = array<i64: 2>, scalar_prefetch = 0 : i64, scratch_operands = 0 : i64, tpu.core_type = #tpu.core_type<tc>, window_params = [{transform_indices = @transform_0, window_bounds = array<i64: 32, 32>}, {pipeline_mode = #tpu.pipeline_mode<synchronous>, transform_indices = @transform_1, window_bounds = array<i64: 32, 128>}, {pipeline_mode = #tpu.pipeline_mode<synchronous>, transform_indices = @transform_2, window_bounds = array<i64: 128, 128>}, {pipeline_mode = #tpu.pipeline_mode<synchronous>, transform_indices = @transform_3, window_bounds = array<i64: 128, 128>}, {pipeline_mode = #tpu.pipeline_mode<synchronous>, transform_indices = @transform_4, window_bounds = array<i64: 3, 128>}, {transform_indices = @transform_5, window_bounds = array<i64: 32, 128>}]} {
    %c0 = arith.constant 0 : index
    %c0_0 = arith.constant 0 : index
    %0 = vector.load %arg1[%c0, %c0_0] : memref<32x32xf32, #tpu.memory_space<vmem>>, vector<32x32xf32>
    %1 = arith.truncf %0 : vector<32x32xf32> to vector<32x32xbf16>
    %c0_1 = arith.constant 0 : index
    %c0_2 = arith.constant 0 : index
    %2 = vector.load %arg2[%c0_1, %c0_2] : memref<32x128xbf16, #tpu.memory_space<vmem>>, vector<32x128xbf16>
    %cst = arith.constant dense<0.000000e+00> : vector<32x128xf32>
    %3 = tpu.matmul %1, %2, %cst {dimension_numbers = #tpu.dot_dimension_numbers<[1], [0], [0], [1], [0, 0, 1, 1], [], []>} : vector<32x32xbf16>, vector<32x128xbf16>, vector<32x128xf32> -> vector<32x128xf32>
    %c0_3 = arith.constant 0 : index
    %c0_4 = arith.constant 0 : index
    %4 = vector.load %arg5[%c0_3, %c0_4] : memref<3x128xf32, #tpu.memory_space<vmem>>, vector<1x128xf32>
    %5 = vector.broadcast %4 : vector<1x128xf32> to vector<32x128xf32>
    %6 = arith.addf %3, %5 : vector<32x128xf32>
    %cst_5 = arith.constant 0.000000e+00 : f32
    %7 = vector.broadcast %cst_5 : f32 to vector<32x128xf32>
    %8 = arith.maximumf %6, %7 : vector<32x128xf32>
    %9 = arith.truncf %8 : vector<32x128xf32> to vector<32x128xbf16>
    %c0_6 = arith.constant 0 : index
    %c0_7 = arith.constant 0 : index
    %10 = vector.load %arg3[%c0_6, %c0_7] : memref<128x128xbf16, #tpu.memory_space<vmem>>, vector<128x128xbf16>
    %cst_8 = arith.constant dense<0.000000e+00> : vector<32x128xf32>
    %11 = tpu.matmul %9, %10, %cst_8 {dimension_numbers = #tpu.dot_dimension_numbers<[1], [0], [0], [1], [0, 0, 1, 1], [], []>} : vector<32x128xbf16>, vector<128x128xbf16>, vector<32x128xf32> -> vector<32x128xf32>
    %c1 = arith.constant 1 : index
    %c0_9 = arith.constant 0 : index
    %12 = vector.load %arg5[%c1, %c0_9] : memref<3x128xf32, #tpu.memory_space<vmem>>, vector<1x128xf32>
    %13 = vector.broadcast %12 : vector<1x128xf32> to vector<32x128xf32>
    %14 = arith.addf %11, %13 : vector<32x128xf32>
    %cst_10 = arith.constant 0.000000e+00 : f32
    %15 = vector.broadcast %cst_10 : f32 to vector<32x128xf32>
    %16 = arith.maximumf %14, %15 : vector<32x128xf32>
    %17 = arith.truncf %16 : vector<32x128xf32> to vector<32x128xbf16>
    %c0_11 = arith.constant 0 : index
    %c0_12 = arith.constant 0 : index
    %18 = vector.load %arg4[%c0_11, %c0_12] : memref<128x128xbf16, #tpu.memory_space<vmem>>, vector<128x128xbf16>
    %cst_13 = arith.constant dense<0.000000e+00> : vector<32x128xf32>
    %19 = tpu.matmul %17, %18, %cst_13 {dimension_numbers = #tpu.dot_dimension_numbers<[1], [0], [0], [1], [0, 0, 1, 1], [], []>} : vector<32x128xbf16>, vector<128x128xbf16>, vector<32x128xf32> -> vector<32x128xf32>
    %c2 = arith.constant 2 : index
    %c0_14 = arith.constant 0 : index
    %20 = vector.load %arg5[%c2, %c0_14] : memref<3x128xf32, #tpu.memory_space<vmem>>, vector<1x128xf32>
    %21 = vector.broadcast %20 : vector<1x128xf32> to vector<32x128xf32>
    %22 = arith.addf %19, %21 : vector<32x128xf32>
    %23 = arith.truncf %22 : vector<32x128xf32> to vector<32x128xbf16>
    %c0_15 = arith.constant 0 : index
    %c0_16 = arith.constant 0 : index
    %24 = vector.load %arg6[%c0_15, %c0_16] : memref<32x128xbf16, #tpu.memory_space<vmem>>, vector<32x128xbf16>
    tpu.vector_store %arg6[%c0_15, %c0_16], %23 {strides = array<i32>} : memref<32x128xbf16, #tpu.memory_space<vmem>>, vector<32x128xbf16>,
    return
  }
  func.func @transform_0(%arg0: i32) -> (i32, i32) {
    %c0_i32 = arith.constant 0 : i32
    %c0_i32_0 = arith.constant 0 : i32
    return %arg0, %c0_i32 : i32, i32
  }
  func.func @transform_1(%arg0: i32) -> (i32, i32) {
    %c0_i32 = arith.constant 0 : i32
    %c0_i32_0 = arith.constant 0 : i32
    %c0_i32_1 = arith.constant 0 : i32
    return %c0_i32, %c0_i32_0 : i32, i32
  }
  func.func @transform_2(%arg0: i32) -> (i32, i32) {
    %c0_i32 = arith.constant 0 : i32
    %c0_i32_0 = arith.constant 0 : i32
    %c0_i32_1 = arith.constant 0 : i32
    return %c0_i32, %c0_i32_0 : i32, i32
  }
  func.func @transform_3(%arg0: i32) -> (i32, i32) {
    %c0_i32 = arith.constant 0 : i32
    %c0_i32_0 = arith.constant 0 : i32
    %c0_i32_1 = arith.constant 0 : i32
    return %c0_i32, %c0_i32_0 : i32, i32
  }
  func.func @transform_4(%arg0: i32) -> (i32, i32) {
    %c0_i32 = arith.constant 0 : i32
    %c0_i32_0 = arith.constant 0 : i32
    %c0_i32_1 = arith.constant 0 : i32
    return %c0_i32, %c0_i32_0 : i32, i32
  }
  func.func @transform_5(%arg0: i32) -> (i32, i32) {
    %c0_i32 = arith.constant 0 : i32
    %c0_i32_0 = arith.constant 0 : i32
    return %arg0, %c0_i32 : i32, i32
  }
}

</mosaic_0001>

<llo_original>
// kernel: tpu_custom_call.1
$region0: #{tpu_custom_call.1}
  #allocation0 [shape = 'u32[]', space=smem, size = 0x4, offset = 0x4, fixed_abs, tag = 'smem constant byte address 0x4 - core index']
  #allocation1 [shape = 'u32[144,128]{1,0:T(1,128)}', space=vmem, size = 0x12000, scoped, tag = 'internal scratch']
  %s0 = inlined_call_operand.vmem [shape: f32[64,32], index: 0, kind: input, shape index: {}]
  %s1 = inlined_call_operand.vmem [shape: bf16[32,128], index: 1, kind: input, shape index: {}]
  %s2 = inlined_call_operand.vmem [shape: bf16[128,128], index: 2, kind: input, shape index: {}]
  %s3 = inlined_call_operand.hbm [shape: bf16[128,128], index: 3, kind: input, shape index: {}]
  %s4 = inlined_call_operand.vmem [shape: f32[3,128], index: 4, kind: input, shape index: {}]
  %s5 = inlined_call_operand.hbm [shape: bf16[64,128], index: 5, kind: output, shape index: {}]
  %s6 = sld [smem:[#allocation0]]
  $region57: #{tpu_custom_call.1} parent=0
    _
  %s8 = ssub.s32 1, %s6
  %s9 = scalar_select 0, %s8, %s6
  $region1: #{tpu_custom_call.1} parent=0
    #allocation2 [shape = 'u8[32768]{0}', space=vmem, size = 0x8000, scoped, tag = 'input window, operand 3, single buffered']
    #allocation3 [shape = 's32[2]{0}', space=sflag, size = 0x8, scoped, tag = 'scoped memory for tpu_custom_call.1']
    #allocation4 [shape = 's32[2]{0}', space=sflag, size = 0x8, scoped, tag = 'scoped memory for tpu_custom_call.1']
    #allocation5 [shape = 'u8[16384]{0}', space=vmem, size = 0x4000, scoped, tag = 'output window, operand 0']
    %10 = vsyncpa [#allocation3], 0
    %11 = vsyncpa [#allocation4], 0
    %s12 = scalar_lea.sflag [#allocation4], 1
    %13 = vsyncpa %s12, 0
    loop: start=0, step=1, limit=4
    $region2: #{tpu_custom_call.1} parent=1 // loop_pre_header
      _
    $region3: #{tpu_custom_call.1} parent=1 // loop_header
      %s15 = sphi 0, %s19
      %p16 = scmp.ge.s32.totalorder %s15, 4
      %s25 = sphi 0, %s27
      %s28 = sphi 0, %s25
      %s29 = sphi 0, %s28
      %s45 = sphi 0, %s29
      %s49 = sphi 0, %s49
      %s51 = sphi 0, %s49
      %s52 = sphi 0, %s51
      %s66 = sphi 0, %s52
      %s70 = sphi 0, %s70
      %s72 = sphi 0, %s70
      %s73 = sphi 0, %s72
      %s87 = sphi 0, %s73
      %s91 = sphi 0, %s91
      %s93 = sphi 0, %s91
      %s94 = sphi 0, %s93
      %s108 = sphi 0, %s94
      %s112 = sphi 0, %s112
      %s114 = sphi 0, %s112
      %s115 = sphi 0, %s114
      %s129 = sphi 0, %s115
      %s135 = sphi 0, %s137
      %s138 = sphi 0, %s135
      %s139 = sphi 0, %s138
      %s155 = sphi 0, %s139
    $region4: #{tpu_custom_call.1} parent=1 // loop_header_branch
      %18 = sbr.rel (%p16) target = $region8
    $region5: #{tpu_custom_call.1} parent=1 // loop_body
      %s20 = ssub.s32 %s15, 1
      %s21 = ssub.s32 %s15, 2
      %s22 = sadd.s32 %s15, 1
      %s23 = ssub.s32 %s15, %s22
      %p24 = scmp.eq.s32.totalorder %s23, 0
      %s26 = sadd.s32 %s25, 1
      %s27 = scalar_select %p24, %s25, %s26
      %p30 = pneg %p24
      %p31 = scmp.eq.s32.totalorder %s15, 1
      %p32 = por %p30, %p31
      %p33 = scmp.ne.s32.totalorder %s25, %s28
      %p34 = scmp.eq.s32.totalorder %s15, 0
      %p35 = por %p33, %p34
      %p36 = scmp.ne.s32.totalorder %s25, %s28
      %p37 = scmp.eq.s32.totalorder %s20, 1
      %p38 = por %p36, %p37
      %p39 = scmp.ne.s32.totalorder %s28, %s29
      %p40 = scmp.eq.s32.totalorder %s20, 0
      %p41 = por %p39, %p40
      %p42 = scmp.ne.s32.totalorder %s28, %s29
      %p43 = scmp.eq.s32.totalorder %s21, 1
      %p44 = por %p42, %p43
      %p46 = scmp.ne.s32.totalorder %s29, %s45
      %p47 = scmp.eq.s32.totalorder %s21, 0
      %p48 = por %p46, %p47
      %s50 = sadd.s32 %s49, 1
      %p53 = scmp.eq.s32.totalorder %s15, 1
      %p54 = scmp.ne.s32.totalorder %s49, %s51
      %p55 = scmp.eq.s32.totalorder %s15, 0
      %p56 = por %p54, %p55
      %p57 = scmp.ne.s32.totalorder %s49, %s51
      %p58 = scmp.eq.s32.totalorder %s20, 1
      %p59 = por %p57, %p58
      %p60 = scmp.ne.s32.totalorder %s51, %s52
      %p61 = scmp.eq.s32.totalorder %s20, 0
      %p62 = por %p60, %p61
      %p63 = scmp.ne.s32.totalorder %s51, %s52
      %p64 = scmp.eq.s32.totalorder %s21, 1
      %p65 = por %p63, %p64
      %p67 = scmp.ne.s32.totalorder %s52, %s66
      %p68 = scmp.eq.s32.totalorder %s21, 0
      %p69 = por %p67, %p68
      %s71 = sadd.s32 %s70, 1
      %p74 = scmp.eq.s32.totalorder %s15, 1
      %p75 = scmp.ne.s32.totalorder %s70, %s72
      %p76 = scmp.eq.s32.totalorder %s15, 0
      %p77 = por %p75, %p76
      %p78 = scmp.ne.s32.totalorder %s70, %s72
      %p79 = scmp.eq.s32.totalorder %s20, 1
      %p80 = por %p78, %p79
      %p81 = scmp.ne.s32.totalorder %s72, %s73
      %p82 = scmp.eq.s32.totalorder %s20, 0
      %p83 = por %p81, %p82
      %p84 = scmp.ne.s32.totalorder %s72, %s73
      %p85 = scmp.eq.s32.totalorder %s21, 1
      %p86 = por %p84, %p85
      %p88 = scmp.ne.s32.totalorder %s73, %s87
      %p89 = scmp.eq.s32.totalorder %s21, 0
      %p90 = por %p88, %p89
      %s92 = sadd.s32 %s91, 1
      %p95 = scmp.eq.s32.totalorder %s15, 1
      %p96 = scmp.ne.s32.totalorder %s91, %s93
      %p97 = scmp.eq.s32.totalorder %s15, 0
      %p98 = por %p96, %p97
      %p99 = scmp.ne.s32.totalorder %s91, %s93
      %p100 = scmp.eq.s32.totalorder %s20, 1
      %p101 = por %p99, %p100
      %p102 = scmp.ne.s32.totalorder %s93, %s94
      %p103 = scmp.eq.s32.totalorder %s20, 0
      %p104 = por %p102, %p103
      %p105 = scmp.ne.s32.totalorder %s93, %s94
      %p106 = scmp.eq.s32.totalorder %s21, 1
      %p107 = por %p105, %p106
      %p109 = scmp.ne.s32.totalorder %s94, %s108
      %p110 = scmp.eq.s32.totalorder %s21, 0
      %p111 = por %p109, %p110
      %s113 = sadd.s32 %s112, 1
      %p116 = scmp.eq.s32.totalorder %s15, 1
      %p117 = scmp.ne.s32.totalorder %s112, %s114
      %p118 = scmp.eq.s32.totalorder %s15, 0
      %p119 = por %p117, %p118
      %p120 = scmp.ne.s32.totalorder %s112, %s114
      %p121 = scmp.eq.s32.totalorder %s20, 1
      %p122 = por %p120, %p121
      %p123 = scmp.ne.s32.totalorder %s114, %s115
      %p124 = scmp.eq.s32.totalorder %s20, 0
      %p125 = por %p123, %p124
      %p126 = scmp.ne.s32.totalorder %s114, %s115
      %p127 = scmp.eq.s32.totalorder %s21, 1
      %p128 = por %p126, %p127
      %p130 = scmp.ne.s32.totalorder %s115, %s129
      %p131 = scmp.eq.s32.totalorder %s21, 0
      %p132 = por %p130, %p131
      %s133 = ssub.s32 %s15, %s22
      %p134 = scmp.eq.s32.totalorder %s133, 0
      %s136 = sadd.s32 %s135, 1
      %s137 = scalar_select %p134, %s135, %s136
      %p140 = pneg %p134
      %p141 = scmp.eq.s32.totalorder %s15, 1
      %p142 = por %p140, %p141
      %p143 = scmp.ne.s32.totalorder %s135, %s138
      %p144 = scmp.eq.s32.totalorder %s15, 0
      %p145 = por %p143, %p144
      %p146 = scmp.ne.s32.totalorder %s135, %s138
      %p147 = scmp.eq.s32.totalorder %s20, 1
      %p148 = por %p146, %p147
      %p149 = scmp.ne.s32.totalorder %s138, %s139
      %p150 = scmp.eq.s32.totalorder %s20, 0
      %p151 = por %p149, %p150
      %p152 = scmp.ne.s32.totalorder %s138, %s139
      %p153 = scmp.eq.s32.totalorder %s21, 1
      %p154 = por %p152, %p153
      %p156 = scmp.ne.s32.totalorder %s139, %s155
      %p157 = scmp.eq.s32.totalorder %s21, 0
      %p158 = por %p156, %p157
      %p159 = scmp.le.s32.totalorder 1, %s15
      %p160 = scmp.lt.s32.totalorder %s15, 3
      %p161 = pnand %p159, %p160
      %p162 = pneg %p161
      // Predicated region
      $region9: #{tpu_custom_call.1} parent=5 // pred_check
        _
      $region10: #{tpu_custom_call.1} parent=5 // pred_check_branch
        %164 = sbr.rel (%p161) target = $region12
      $region11: #{tpu_custom_call.1} parent=5 // pred_region
        %s165 = ssub.s32 %s15, 1
        // Predicated region
        $region13: #{tpu_custom_call.1} parent=11 // pred_check
          %p166 = pneg %p62
        $region14: #{tpu_custom_call.1} parent=11 // pred_check_branch
          %168 = sbr.rel (%p166) target = $region16
        $region15: #{tpu_custom_call.1} parent=11 // pred_region
          _
        $region16: #{tpu_custom_call.1} parent=11 // pred_fallthru
          _
        // Predicated region
        $region17: #{tpu_custom_call.1} parent=11 // pred_check
          %p169 = pneg %p83
        $region18: #{tpu_custom_call.1} parent=11 // pred_check_branch
          %171 = sbr.rel (%p169) target = $region20
        $region19: #{tpu_custom_call.1} parent=11 // pred_region
          _
        $region20: #{tpu_custom_call.1} parent=11 // pred_fallthru
          _
        // Predicated region
        $region21: #{tpu_custom_call.1} parent=11 // pred_check
          %p172 = pneg %p104
        $region22: #{tpu_custom_call.1} parent=11 // pred_check_branch
          %174 = sbr.rel (%p172) target = $region24
        $region23: #{tpu_custom_call.1} parent=11 // pred_region
          %s176 = ssub.s32 1024, 1024
          %177 = vsyncadd [#allocation3], %s176
          %s178 = sshll.u32 [#allocation2], 4
          %s179 = int_to_ptr.vmem [resolvable:$true] %s178
          %184 = dma.hbm_to_vmem [thread:$0]  %s3, 1024, %s179, [#allocation3], 64, 64, 4
        $region24: #{tpu_custom_call.1} parent=11 // pred_fallthru
          _
        // Predicated region
        $region25: #{tpu_custom_call.1} parent=11 // pred_check
          %p185 = pneg %p125
        $region26: #{tpu_custom_call.1} parent=11 // pred_check_branch
          %187 = sbr.rel (%p185) target = $region28
        $region27: #{tpu_custom_call.1} parent=11 // pred_region
          _
        $region28: #{tpu_custom_call.1} parent=11 // pred_fallthru
          _
      $region12: #{tpu_custom_call.1} parent=5 // pred_fallthru
        _
      %p188 = scmp.lt.s32.totalorder %s15, 2
      // Predicated region
      $region29: #{tpu_custom_call.1} parent=5 // pred_check
        %p189 = pneg %p188
      $region30: #{tpu_custom_call.1} parent=5 // pred_check_branch
        %191 = sbr.rel (%p189) target = $region32
      $region31: #{tpu_custom_call.1} parent=5 // pred_region
        // Predicated region
        $region33: #{tpu_custom_call.1} parent=31 // pred_check
          %p192 = pneg %p35
        $region34: #{tpu_custom_call.1} parent=31 // pred_check_branch
          %194 = sbr.rel (%p192) target = $region36
        $region35: #{tpu_custom_call.1} parent=31 // pred_region
          %s195 = smul.u32 4, %s15
          %p196 = scmp.lt.s32.totalorder %s195, 7
          %s197 = scalar_select %p196, %s195, 7
          %s198 = smul.addr %s197, 8
          %s199 = scalar_lea.vmem %s0, %s198
          %s200 = smul.u32 4, %s15
        $region36: #{tpu_custom_call.1} parent=31 // pred_fallthru
          _
      $region32: #{tpu_custom_call.1} parent=5 // pred_fallthru
        _
      %p201 = scmp.le.s32.totalorder 1, %s15
      %p202 = scmp.lt.s32.totalorder %s15, 3
      %p203 = pnand %p201, %p202
      %p204 = pneg %p203
      // Predicated region
      $region37: #{tpu_custom_call.1} parent=5 // pred_check
        _
      $region38: #{tpu_custom_call.1} parent=5 // pred_check_branch
        %206 = sbr.rel (%p203) target = $region40
      $region39: #{tpu_custom_call.1} parent=5 // pred_region
        %s207 = ssub.s32 %s15, 1
        // Predicated region
        $region41: #{tpu_custom_call.1} parent=39 // pred_check
          %p208 = pneg %p104
        $region42: #{tpu_custom_call.1} parent=39 // pred_check_branch
          %210 = sbr.rel (%p208) target = $region44
        $region43: #{tpu_custom_call.1} parent=39 // pred_region
          %211 = dma.done [#allocation3], 1024
        $region44: #{tpu_custom_call.1} parent=39 // pred_fallthru
          _
        %s212 = smul.u32 4, %s20
        %p213 = scmp.lt.s32.totalorder %s212, 7
        %s214 = scalar_select %p213, %s212, 7
        %s215 = smul.addr %s214, 8
        %s216 = scalar_lea.vmem %s0, %s215
        %p217 = pneg %p41
        %p218 = pneg %p38
        %p219 = pneg %p62
        %p220 = pneg %p59
        %p221 = pneg %p83
        %p222 = pneg %p80
        %p223 = pneg %p104
        %p224 = pneg %p101
        %p225 = pneg %p125
        %p226 = pneg %p122
        %p227 = pneg %p151
        %p228 = pneg %p148
        %s229 = sand.u32 %s138, 1
        %s230 = scalar_lea.sflag [#allocation4], %s229
        %s231 = sand.u32 %s138, 1
        %s232 = smul.addr %s231, 16
        %s233 = scalar_lea.vmem [#allocation5], %s232
        %s234 = smul.u32 4, %s20
        %p235 = scmp.lt.s32.totalorder %s234, 7
        %s236 = scalar_select %p235, %s234, 7
        %s237 = smul.addr %s236, 8
        %s238 = scalar_lea.vmem %s0, %s237
        %s239 = smul.u32 4, %s20
        %s240 = smul.u32 4, %s20
        %v242 = vld [vmem:[%s238] sm:$0xff]
        %v243 = vld [vmem:[%s238 + $0x8] sm:$0xff]
        %v244 = vld [vmem:[%s238 + $0x10] sm:$0xff]
        %v245 = vld [vmem:[%s238 + $0x18] sm:$0xff]
        %v246 = vpack.c.bf16 %v243, %v242
        %v247 = vpack.c.bf16 %v245, %v244
        %v248 = vld [vmem:[%s1] sm:$0xf]
        %v249 = vld [vmem:[%s1 + $0x4] sm:$0xf]
        %v250 = vld [vmem:[%s1 + $0x8] sm:$0xf]
        %v251 = vld [vmem:[%s1 + $0xc] sm:$0xf]
        %v252 = vld [vmem:[%s4] sm:$0x1]
        %v253 = vlaneseq
        %v254 = vshrl.u32 %v253, 7
        %v255 = vsub.s32 0, %v254
        %v256 = vrot.slane %v252, %v255
        %v261 = vunpack.c.l.b16 %v248
        %v262 = vunpack.c.l.b16 %v249
        %v263 = vunpack.c.l.b16 %v250
        %v264 = vunpack.c.l.b16 %v251
        %v265 = vpack.c.b16 %v262, %v261
        %v266 = vpack.c.b16 %v264, %v263
        %vm269 = vcmask 261120
        %v271 = vsel %vm269, %v246, 0
        %v274 = vsel %vm269, %v247, 0
        %276 = vmatprep.subr.bf16.mxu0 0
        %277 = vmatpush1.bf16.msra.mxu0 %v265
        %278 = vmatprep.subr.bf16.mxu0 0
        %279 = vmatpush1.bf16.msra.mxu0 %v266
        %280 = vmatprep.subr.bf16.mxu0 0
        %281 = vmatpush1.bf16.msra.mxu0 0
        %282 = vmatprep.subr.bf16.mxu0 0
        %283 = vmatpush1.bf16.msra.mxu0 0
        %284 = vmatprep.subr.bf16.mxu0 0
        %285 = vmatpush1.bf16.msra.mxu0 0
        %286 = vmatprep.subr.bf16.mxu0 0
        %287 = vmatpush1.bf16.msra.mxu0 0
        %288 = vmatprep.subr.bf16.mxu0 0
        %289 = vmatpush1.bf16.msra.mxu0 0
        %290 = vmatprep.subr.bf16.mxu0 0
        %291 = vmatpush1.bf16.msra.mxu0 0
        %292 = vmatprep.subr.bf16.mxu0 0
        %293 = vmatpush1.bf16.msra.mxu0 0
        %294 = vmatprep.subr.bf16.mxu0 0
        %295 = vmatpush1.bf16.msra.mxu0 0
        %296 = vmatprep.subr.bf16.mxu0 0
        %297 = vmatpush1.bf16.msra.mxu0 0
        %298 = vmatprep.subr.bf16.mxu0 0
        %299 = vmatpush1.bf16.msra.mxu0 0
        %300 = vmatprep.subr.bf16.mxu0 0
        %301 = vmatpush1.bf16.msra.mxu0 0
        %302 = vmatprep.subr.bf16.mxu0 0
        %303 = vmatpush1.bf16.msra.mxu0 0
        %304 = vmatprep.subr.bf16.mxu0 0
        %305 = vmatpush1.bf16.msra.mxu0 0
        %306 = vmatprep.subr.bf16.mxu0 0
        %307 = vmatpush1.bf16.msra.mxu0 0
        %308 = vmatprep.mubr.bf16.mxu0 0
        %309 = vmatmul.mubr.bf16.gmra.mrb[0].mxu0 %v271
        %v310 = vpop.f32.mrb[0].mxu0
        %v311 = vadd.f32 %v256, %v310
        %v312 = vpop.f32.mrb[0].mxu0
        %v313 = vpop.f32.mrb[0].mxu0
        %v314 = vadd.f32 %v256, %v313
        %v315 = vpop.f32.mrb[0].mxu0
        %316 = vmatprep.mubr.bf16.mxu0 0
        %317 = vmatmul.mubr.bf16.gmra.mrb[0].mxu0 %v274
        %v318 = vpop.f32.mrb[0].mxu0
        %v319 = vadd.f32 %v256, %v318
        %v320 = vpop.f32.mrb[0].mxu0
        %v321 = vpop.f32.mrb[0].mxu0
        %v322 = vadd.f32 %v256, %v321
        %v323 = vpop.f32.mrb[0].mxu0
        %324 = vdwg.mxu0
        %v325 = vmax.f32 %v311, 0.0
        %v326 = vmax.f32 %v314, 0.0
        %v327 = vmax.f32 %v319, 0.0
        %v328 = vmax.f32 %v322, 0.0
        %v329 = vpack.c.bf16 %v326, %v325
        %v330 = vpack.c.bf16 %v328, %v327
        %v331 = vld [vmem:[%s2] sm:$0xf]
        %v332 = vld [vmem:[%s2 + $0x4] sm:$0xf]
        %v333 = vld [vmem:[%s2 + $0x8] sm:$0xf]
        %v334 = vld [vmem:[%s2 + $0xc] sm:$0xf]
        %v335 = vld [vmem:[%s2 + $0x10] sm:$0xf]
        %v336 = vld [vmem:[%s2 + $0x14] sm:$0xf]
        %v337 = vld [vmem:[%s2 + $0x18] sm:$0xf]
        %v338 = vld [vmem:[%s2 + $0x1c] sm:$0xf]
        %v339 = vld [vmem:[%s2 + $0x20] sm:$0xf]
        %v340 = vld [vmem:[%s2 + $0x24] sm:$0xf]
        %v341 = vld [vmem:[%s2 + $0x28] sm:$0xf]
        %v342 = vld [vmem:[%s2 + $0x2c] sm:$0xf]
        %v343 = vld [vmem:[%s2 + $0x30] sm:$0xf]
        %v344 = vld [vmem:[%s2 + $0x34] sm:$0xf]
        %v345 = vld [vmem:[%s2 + $0x38] sm:$0xf]
        %v346 = vld [vmem:[%s2 + $0x3c] sm:$0xf]
        %v347 = vld [vmem:[%s4 + $0x1] sm:$0x1]
        %v348 = vlaneseq
        %v349 = vshrl.u32 %v348, 7
        %v350 = vsub.s32 0, %v349
        %v351 = vrot.slane %v347, %v350
        %v368 = vunpack.c.l.b16 %v331
        %v369 = vunpack.c.l.b16 %v332
        %v370 = vunpack.c.l.b16 %v333
        %v371 = vunpack.c.l.b16 %v334
        %v372 = vunpack.c.l.b16 %v335
        %v373 = vunpack.c.l.b16 %v336
        %v374 = vunpack.c.l.b16 %v337
        %v375 = vunpack.c.l.b16 %v338
        %v376 = vunpack.c.l.b16 %v339
        %v377 = vunpack.c.l.b16 %v340
        %v378 = vunpack.c.l.b16 %v341
        %v379 = vunpack.c.l.b16 %v342
        %v380 = vunpack.c.l.b16 %v343
        %v381 = vunpack.c.l.b16 %v344
        %v382 = vunpack.c.l.b16 %v345
        %v383 = vunpack.c.l.b16 %v346
        %v384 = vpack.c.b16 %v369, %v368
        %v385 = vpack.c.b16 %v371, %v370
        %v386 = vpack.c.b16 %v373, %v372
        %v387 = vpack.c.b16 %v375, %v374
        %v388 = vpack.c.b16 %v377, %v376
        %v389 = vpack.c.b16 %v379, %v378
        %v390 = vpack.c.b16 %v381, %v380
        %v391 = vpack.c.b16 %v383, %v382
        %400 = vmatprep.subr.bf16.mxu0 0
        %401 = vmatpush1.bf16.msra.mxu0 %v384
        %402 = vmatprep.subr.bf16.mxu0 0
        %403 = vmatpush1.bf16.msra.mxu0 %v385
        %404 = vmatprep.subr.bf16.mxu0 0
        %405 = vmatpush1.bf16.msra.mxu0 %v386
        %406 = vmatprep.subr.bf16.mxu0 0
        %407 = vmatpush1.bf16.msra.mxu0 %v387
        %408 = vmatprep.subr.bf16.mxu0 0
        %409 = vmatpush1.bf16.msra.mxu0 %v388
        %410 = vmatprep.subr.bf16.mxu0 0
        %411 = vmatpush1.bf16.msra.mxu0 %v389
        %412 = vmatprep.subr.bf16.mxu0 0
        %413 = vmatpush1.bf16.msra.mxu0 %v390
        %414 = vmatprep.subr.bf16.mxu0 0
        %415 = vmatpush1.bf16.msra.mxu0 %v391
        %416 = vmatprep.subr.bf16.mxu0 0
        %417 = vmatpush1.bf16.msra.mxu0 0
        %418 = vmatprep.subr.bf16.mxu0 0
        %419 = vmatpush1.bf16.msra.mxu0 0
        %420 = vmatprep.subr.bf16.mxu0 0
        %421 = vmatpush1.bf16.msra.mxu0 0
        %422 = vmatprep.subr.bf16.mxu0 0
        %423 = vmatpush1.bf16.msra.mxu0 0
        %424 = vmatprep.subr.bf16.mxu0 0
        %425 = vmatpush1.bf16.msra.mxu0 0
        %426 = vmatprep.subr.bf16.mxu0 0
        %427 = vmatpush1.bf16.msra.mxu0 0
        %428 = vmatprep.subr.bf16.mxu0 0
        %429 = vmatpush1.bf16.msra.mxu0 0
        %430 = vmatprep.subr.bf16.mxu0 0
        %431 = vmatpush1.bf16.msra.mxu0 0
        %432 = vmatprep.mubr.bf16.mxu0 0
        %433 = vmatmul.mubr.bf16.gmra.mrb[0].mxu0 %v329
        %v434 = vpop.f32.mrb[0].mxu0
        %v435 = vadd.f32 %v351, %v434
        %v436 = vpop.f32.mrb[0].mxu0
        %v437 = vpop.f32.mrb[0].mxu0
        %v438 = vadd.f32 %v351, %v437
        %v439 = vpop.f32.mrb[0].mxu0
        %440 = vmatprep.mubr.bf16.mxu0 0
        %441 = vmatmul.mubr.bf16.gmra.mrb[0].mxu0 %v330
        %v442 = vpop.f32.mrb[0].mxu0
        %v443 = vadd.f32 %v351, %v442
        %v444 = vpop.f32.mrb[0].mxu0
        %v445 = vpop.f32.mrb[0].mxu0
        %v446 = vadd.f32 %v351, %v445
        %v447 = vpop.f32.mrb[0].mxu0
        %448 = vdwg.mxu0
        %v449 = vmax.f32 %v435, 0.0
        %v450 = vmax.f32 %v438, 0.0
        %v451 = vmax.f32 %v443, 0.0
        %v452 = vmax.f32 %v446, 0.0
        %v453 = vpack.c.bf16 %v450, %v449
        %v454 = vpack.c.bf16 %v452, %v451
        %v455 = vld [vmem:[#allocation2] sm:$0xf]
        %v456 = vld [vmem:[#allocation2 + $0x4] sm:$0xf]
        %v457 = vld [vmem:[#allocation2 + $0x8] sm:$0xf]
        %v458 = vld [vmem:[#allocation2 + $0xc] sm:$0xf]
        %v459 = vld [vmem:[#allocation2 + $0x10] sm:$0xf]
        %v460 = vld [vmem:[#allocation2 + $0x14] sm:$0xf]
        %v461 = vld [vmem:[#allocation2 + $0x18] sm:$0xf]
        %v462 = vld [vmem:[#allocation2 + $0x1c] sm:$0xf]
        %v463 = vld [vmem:[#allocation2 + $0x20] sm:$0xf]
        %v464 = vld [vmem:[#allocation2 + $0x24] sm:$0xf]
        %v465 = vld [vmem:[#allocation2 + $0x28] sm:$0xf]
        %v466 = vld [vmem:[#allocation2 + $0x2c] sm:$0xf]
        %v467 = vld [vmem:[#allocation2 + $0x30] sm:$0xf]
        %v468 = vld [vmem:[#allocation2 + $0x34] sm:$0xf]
        %v469 = vld [vmem:[#allocation2 + $0x38] sm:$0xf]
        %v470 = vld [vmem:[#allocation2 + $0x3c] sm:$0xf]
        %v471 = vld [vmem:[%s4 + $0x2] sm:$0x1]
        %v472 = vlaneseq
        %v473 = vshrl.u32 %v472, 7
        %v474 = vsub.s32 0, %v473
        %v475 = vrot.slane %v471, %v474
        %v492 = vunpack.c.l.b16 %v455
        %v493 = vunpack.c.l.b16 %v456
        %v494 = vunpack.c.l.b16 %v457
        %v495 = vunpack.c.l.b16 %v458
        %v496 = vunpack.c.l.b16 %v459
        %v497 = vunpack.c.l.b16 %v460
        %v498 = vunpack.c.l.b16 %v461
        %v499 = vunpack.c.l.b16 %v462
        %v500 = vunpack.c.l.b16 %v463
        %v501 = vunpack.c.l.b16 %v464
        %v502 = vunpack.c.l.b16 %v465
        %v503 = vunpack.c.l.b16 %v466
        %v504 = vunpack.c.l.b16 %v467
        %v505 = vunpack.c.l.b16 %v468
        %v506 = vunpack.c.l.b16 %v469
        %v507 = vunpack.c.l.b16 %v470
        %v508 = vpack.c.b16 %v493, %v492
        %v509 = vpack.c.b16 %v495, %v494
        %v510 = vpack.c.b16 %v497, %v496
        %v511 = vpack.c.b16 %v499, %v498
        %v512 = vpack.c.b16 %v501, %v500
        %v513 = vpack.c.b16 %v503, %v502
        %v514 = vpack.c.b16 %v505, %v504
        %v515 = vpack.c.b16 %v507, %v506
        %524 = vmatprep.subr.bf16.mxu0 0
        %525 = vmatpush1.bf16.msra.mxu0 %v508
        %526 = vmatprep.subr.bf16.mxu0 0
        %527 = vmatpush1.bf16.msra.mxu0 %v509
        %528 = vmatprep.subr.bf16.mxu0 0
        %529 = vmatpush1.bf16.msra.mxu0 %v510
        %530 = vmatprep.subr.bf16.mxu0 0
        %531 = vmatpush1.bf16.msra.mxu0 %v511
        %532 = vmatprep.subr.bf16.mxu0 0
        %533 = vmatpush1.bf16.msra.mxu0 %v512
        %534 = vmatprep.subr.bf16.mxu0 0
        %535 = vmatpush1.bf16.msra.mxu0 %v513
        %536 = vmatprep.subr.bf16.mxu0 0
        %537 = vmatpush1.bf16.msra.mxu0 %v514
        %538 = vmatprep.subr.bf16.mxu0 0
        %539 = vmatpush1.bf16.msra.mxu0 %v515
        %540 = vmatprep.subr.bf16.mxu0 0
        %541 = vmatpush1.bf16.msra.mxu0 0
        %542 = vmatprep.subr.bf16.mxu0 0
        %543 = vmatpush1.bf16.msra.mxu0 0
        %544 = vmatprep.subr.bf16.mxu0 0
        %545 = vmatpush1.bf16.msra.mxu0 0
        %546 = vmatprep.subr.bf16.mxu0 0
        %547 = vmatpush1.bf16.msra.mxu0 0
        %548 = vmatprep.subr.bf16.mxu0 0
        %549 = vmatpush1.bf16.msra.mxu0 0
        %550 = vmatprep.subr.bf16.mxu0 0
        %551 = vmatpush1.bf16.msra.mxu0 0
        %552 = vmatprep.subr.bf16.mxu0 0
        %553 = vmatpush1.bf16.msra.mxu0 0
        %554 = vmatprep.subr.bf16.mxu0 0
        %555 = vmatpush1.bf16.msra.mxu0 0
        %556 = vmatprep.mubr.bf16.mxu0 0
        %557 = vmatmul.mubr.bf16.gmra.mrb[0].mxu0 %v453
        %v558 = vpop.f32.mrb[0].mxu0
        %v559 = vadd.f32 %v475, %v558
        %v560 = vpop.f32.mrb[0].mxu0
        %v561 = vpop.f32.mrb[0].mxu0
        %v562 = vadd.f32 %v475, %v561
        %v563 = vpop.f32.mrb[0].mxu0
        %564 = vmatprep.mubr.bf16.mxu0 0
        %565 = vmatmul.mubr.bf16.gmra.mrb[0].mxu0 %v454
        %v566 = vpop.f32.mrb[0].mxu0
        %v567 = vadd.f32 %v475, %v566
        %v568 = vpop.f32.mrb[0].mxu0
        %v569 = vpop.f32.mrb[0].mxu0
        %v570 = vadd.f32 %v475, %v569
        %v571 = vpop.f32.mrb[0].mxu0
        %572 = vdwg.mxu0
        %v573 = vpack.c.bf16 %v562, %v559
        %v574 = vpack.c.bf16 %v570, %v567
        %v577 = vunpack.c.l.b16 %v573
        %v578 = vunpack.c.h.b16 %v573
        %v579 = vunpack.c.l.b16 %v574
        %v580 = vunpack.c.h.b16 %v574
        %v581 = vpack.c.b16 %v577, %v577
        %v582 = vpack.c.b16 %v578, %v578
        %v583 = vpack.c.b16 %v579, %v579
        %v584 = vpack.c.b16 %v580, %v580
        %589 = vst [vmem:[%s233] sm:$0xf] %v581
        %590 = vst [vmem:[%s233 + $0x4] sm:$0xf] %v582
        %591 = vst [vmem:[%s233 + $0x8] sm:$0xf] %v583
        %592 = vst [vmem:[%s233 + $0xc] sm:$0xf] %v584
        %s593 = sand.u32 %s138, 1
        %s594 = scalar_lea.sflag [#allocation4], %s593
        %s595 = sand.u32 %s138, 1
        %s596 = smul.addr %s595, 16
        %s597 = scalar_lea.vmem [#allocation5], %s596
        // Predicated region
        $region45: #{tpu_custom_call.1} parent=39 // pred_check
          %p598 = pneg %p148
        $region46: #{tpu_custom_call.1} parent=39 // pred_check_branch
          %600 = sbr.rel (%p598) target = $region48
        $region47: #{tpu_custom_call.1} parent=39 // pred_region
          %s601 = smul.u32 4, %s20
          %s603 = ssub.s32 256, 256
          %604 = vsyncadd %s594, %s603
          %s605 = smul.addr %s601, 64
          %s606 = scalar_lea.hbm %s5, %s605
          %s607 = sshll.u32 %s597, 4
          %s608 = int_to_ptr.vmem [resolvable:$true] %s607
          %613 = dma.vmem_to_hbm [thread:$0]  %s608, 256, %s606, %s594, 64, 64, 4
        $region48: #{tpu_custom_call.1} parent=39 // pred_fallthru
          _
      $region40: #{tpu_custom_call.1} parent=5 // pred_fallthru
        _
      %p614 = scmp.le.s32.totalorder 2, %s15
      // Predicated region
      $region49: #{tpu_custom_call.1} parent=5 // pred_check
        %p615 = pneg %p614
      $region50: #{tpu_custom_call.1} parent=5 // pred_check_branch
        %617 = sbr.rel (%p615) target = $region52
      $region51: #{tpu_custom_call.1} parent=5 // pred_region
        %s618 = ssub.s32 %s15, 2
        // Predicated region
        $region53: #{tpu_custom_call.1} parent=51 // pred_check
          %p619 = pneg %p154
        $region54: #{tpu_custom_call.1} parent=51 // pred_check_branch
          %621 = sbr.rel (%p619) target = $region56
        $region55: #{tpu_custom_call.1} parent=51 // pred_region
          %s622 = sand.u32 %s139, 1
          %s623 = scalar_lea.sflag [#allocation4], %s622
          %s624 = sand.u32 %s139, 1
          %s625 = smul.addr %s624, 16
          %s626 = scalar_lea.vmem [#allocation5], %s625
          %627 = dma.done %s623, 256
        $region56: #{tpu_custom_call.1} parent=51 // pred_fallthru
          _
      $region52: #{tpu_custom_call.1} parent=5 // pred_fallthru
        _
    $region6: #{tpu_custom_call.1} parent=1 // loop_footer
      %s19 = sadd.s32 1, %s15
    $region7: #{tpu_custom_call.1} parent=1 // loop_footer_branch
      %14 = sbr.rel target = $region3
    $region8: #{tpu_custom_call.1} parent=1 // loop_exit
      _
    %628 = vsyncpa [#allocation3], 1
    %s629 = scalar_lea.sflag [#allocation3], 1
    %630 = vsyncpa %s629, 1
    %631 = vsyncpa [#allocation4], 1
    %s632 = scalar_lea.sflag [#allocation4], 1
    %633 = vsyncpa %s632, 1

</llo_original>
